<compile_context>
chip_gen: v5e
topology: v5e:2x2
jax: 0.10.0
libtpu: 0.0.40
codegen_flags: <defaults>
</compile_context>

<pallas_src>
import functools

import jax
import jax.numpy as jnp
from jax.experimental import pallas as pl
from jax.experimental.pallas import tpu as pltpu

_LANES = 128
_SUBLANES = 8
_NUM_PARTIALS = 5  # pos_sum, neg_sum, pos_count, neg_count, ce_sum


def _round_up(x, m):
    return (x + m - 1) // m * m


def _acos_f32(x):
    """float32 acos, branchless Cephes-style asin polynomial.

    One sqrt + ~6 FMAs + a few selects; ~1 ulp accurate over the clamp range
    used below (replaces the old serialized 8x sqrt/divide half-angle chain).
    """
    a = jnp.abs(x)
    big = a > 0.5
    z_big = 0.5 * (1.0 - a)                     # sin^2(theta/2), >= 0
    z = jnp.where(big, z_big, a * a)
    r = jnp.where(big, jnp.sqrt(z_big), a)      # argument of the asin series
    p = 4.2163199048e-2
    p = p * z + 2.4181311049e-2
    p = p * z + 4.5470025998e-2
    p = p * z + 7.4953002686e-2
    p = p * z + 1.6666752422e-1
    asin_r = r + r * z * p
    acos_abs = jnp.where(big, 2.0 * asin_r, 1.5707963267948966 - asin_r)
    return jnp.where(x < 0.0, 3.141592653589793 - acos_abs, acos_abs)


def _amc_partials_kernel(emb_ref, lg_ref, lb_ref, out_ref, *,
                         tm, half, tiles_per_shard, angular_margin, needs_mask):
    """One (p, t) grid step: reduce `tm` sample-pairs to 5 scalar partials."""
    p = pl.program_id(0)
    t = pl.program_id(1)
    g = p * tiles_per_shard + t                  # global row-tile index

    e1 = emb_ref[0].astype(jnp.float32)          # (tm, D)
    e2 = emb_ref[1].astype(jnp.float32)
    lb1 = lb_ref[0]                              # (tm, 1) int32
    lb2 = lb_ref[1]

    if needs_mask:                               # static: only when the tail tile is partial
        row_ids = g * tm + jax.lax.broadcasted_iota(jnp.int32, (tm, 1), 0)
        valid_b = row_ids < half                 # (tm, 1) bool
        valid = valid_b.astype(jnp.float32)
        e1 = jnp.where(valid_b, e1, 0.0)         # keep out-of-range rows finite
        e2 = jnp.where(valid_b, e2, 0.0)

    # ---- AMC pair terms: L2-normalize rows, inner product, geodesic dist ----
    inv1 = jax.lax.rsqrt(jnp.maximum(jnp.sum(e1 * e1, axis=1, keepdims=True), 1e-24))
    inv2 = jax.lax.rsqrt(jnp.maximum(jnp.sum(e2 * e2, axis=1, keepdims=True), 1e-24))
    inner = jnp.sum(e1 * e2, axis=1, keepdims=True) * (inv1 * inv2)
    geo = _acos_f32(jnp.clip(inner, -1.0 + 1e-5, 1.0 - 1e-5))     # (tm, 1)

    pos_b = lb1 == lb2
    if needs_mask:
        pos_b = jnp.logical_and(pos_b, valid_b)
    posf = pos_b.astype(jnp.float32)
    negf = (valid - posf) if needs_mask else (1.0 - posf)
    hinge = jnp.maximum(angular_margin - geo, 0.0)

    pos_sum = jnp.sum(posf * geo * geo)
    neg_sum = jnp.sum(negf * hinge * hinge)
    pos_cnt = jnp.sum(posf)
    neg_cnt = jnp.sum(negf)

    # ---- Cross entropy rows for both halves of this tile ----
    num_classes = lg_ref.shape[-1]
    class_ids = jax.lax.broadcasted_iota(jnp.int32, (1, num_classes), 1)  # (1, C)

    def ce_rows(lg, lb):
        lg = lg.astype(jnp.float32)              # (tm, C)
        if needs_mask:
            lg = jnp.where(valid_b, lg, 0.0)
        shifted = lg - jnp.max(lg, axis=1, keepdims=True)
        # TODO(synk): on v7x, running this exp in bf16 would roughly double EUP
        # throughput; kept in f32 for accuracy + v5e portability (no bf16 EUP).
        lse = jnp.log(jnp.sum(jnp.exp(shifted), axis=1, keepdims=True))
        picked = jnp.sum(jnp.where(class_ids == lb, shifted, 0.0),
                         axis=1, keepdims=True)
        return lse - picked                      # (tm, 1)

    ce = ce_rows(lg_ref[0], lb1) + ce_rows(lg_ref[1], lb2)
    ce_sum = jnp.sum(valid * ce) if needs_mask else jnp.sum(ce)

    # ---- Pack the 5 scalar partials into one (8, 128) block and accumulate ----
    sub = jax.lax.broadcasted_iota(jnp.int32, (_SUBLANES, _LANES), 0)
    lane = jax.lax.broadcasted_iota(jnp.int32, (_SUBLANES, _LANES), 1)
    row0 = sub == 0

    def put(k, v):
        return jnp.where(jnp.logical_and(row0, lane == k), v, 0.0)

    partial = (put(0, pos_sum) + put(1, neg_sum) + put(2, pos_cnt)
               + put(3, neg_cnt) + put(4, ce_sum))

    @pl.when(t == 0)
    def _init():
        out_ref[...] = jnp.zeros_like(out_ref)

    out_ref[...] += partial


def _vmem_limit_bytes():
    """Chip-aware scoped-VMEM limit: half of physical (64 MiB v5e/v6e, 32 MiB v7x)."""
    cap = 0
    try:
        cap = int(getattr(pltpu.get_tpu_info(), "vmem_capacity_bytes", 0))
    except Exception:
        cap = 0
    if cap <= 0:
        cap = 64 * 1024 * 1024                   # conservative fallback (v7x physical)
    return min(cap // 2, 64 * 1024 * 1024)


def _dimension_semantics(n_shards):
    """Leading shard axis: CORE_PARALLEL on multi-TensorCore chips (v7x), else PARALLEL."""
    first = pltpu.PARALLEL
    if n_shards > 1:
        try:
            kind = jax.devices()[0].device_kind.lower()
            if "7" in kind:                      # v7x: 2 TensorCores per chip
                first = pltpu.CORE_PARALLEL
        except Exception:
            pass
    return (first, pltpu.ARBITRARY)


def _choose_tiling(half, d, c, emb_bytes, logit_bytes, *, budget_bytes,
                   max_rows_per_tile=1024):
    """Pick (rows-per-tile tm, num_tiles).  The last tile may be partial (masked)."""
    # Double-buffered input blocks (both halves) + f32 temporaries (casts,
    # shifted/exp CE tiles, small columns) per row of a pair.
    per_row = (2 * 2 * (d * emb_bytes + c * logit_bytes + 4)
               + 4 * (2 * d + 8 * c + 64))
    cap = min(max_rows_per_tile, max(8, budget_bytes // per_row))
    cap = max(8, cap - cap % 8)

    if half <= cap:
        if half >= 16:
            # Split into exactly 2 tiles so the shard axis can feed 2 cores.
            return _round_up(pl.cdiv(half, 2), 8), 2
        return half, 1        # tm == full dim -> no multiple-of-8 constraint

    tiles = pl.cdiv(half, cap)
    if tiles % 2:
        tiles += 1            # aim for an even tile count (2-way core split)
    tm = _round_up(pl.cdiv(half, tiles), 8)
    tiles = pl.cdiv(half, tm)
    if tiles % 2 == 1 and tiles > 1:
        for cand in range(tm - 8, 7, -8):        # restore evenness if rounding broke it
            if pl.cdiv(half, cand) % 2 == 0:
                return cand, pl.cdiv(half, cand)
    return tm, tiles


def amc_loss_with_pairing(embeddings, logits, labels, angular_margin=0.5,
                          lambda_=0.1, *, max_rows_per_tile=1024):
    """JAX/Pallas equivalent of AMCLossWithPairing.forward (forward pass only)."""
    n = embeddings.shape[0]
    if n % 2 == 1:                    # static-shape glue (drop last sample)
        embeddings, logits, labels = embeddings[:-1], logits[:-1], labels[:-1]
        n -= 1
    if n < 2:
        raise ValueError("AMCLossWithPairing needs at least 2 samples")

    half = n // 2
    d = embeddings.shape[1]
    c = logits.shape[1]

    # Free, contiguous reshapes: halves become a leading axis of size 2, so a
    # single BlockSpec per tensor fetches both paired row tiles (no pad copy).
    emb3 = embeddings.reshape(2, half, d)
    log3 = logits.reshape(2, half, c)
    lab3 = labels.astype(jnp.int32).reshape(2, half, 1)

    vmem_limit = _vmem_limit_bytes()
    budget = (vmem_limit * 3) // 4
    tm, tiles = _choose_tiling(half, d, c,
                               jnp.dtype(embeddings.dtype).itemsize,
                               jnp.dtype(logits.dtype).itemsize,
                               budget_bytes=budget,
                               max_rows_per_tile=max_rows_per_tile)
    n_shards = 2 if (tiles >= 2 and tiles % 2 == 0) else 1
    tiles_per_shard = tiles // n_shards
    needs_mask = (tm * tiles != half)            # partial tail tile present

    kernel = functools.partial(
        _amc_partials_kernel, tm=tm, half=half,
        tiles_per_shard=tiles_per_shard,
        angular_margin=float(angular_margin), needs_mask=needs_mask)

    def row_map(p_, t_):
        return (0, p_ * tiles_per_shard + t_, 0)

    partials = pl.pallas_call(
        kernel,
        out_shape=jax.ShapeDtypeStruct((n_shards * _SUBLANES, _LANES), jnp.float32),
        grid_spec=pltpu.PrefetchScalarGridSpec(
            num_scalar_prefetch=0,
            grid=(n_shards, tiles_per_shard),
            in_specs=[
                pl.BlockSpec((2, tm, d), row_map),   # embeddings, both halves
                pl.BlockSpec((2, tm, c), row_map),   # logits, both halves
                pl.BlockSpec((2, tm, 1), row_map),   # labels, both halves
            ],
            out_specs=pl.BlockSpec((_SUBLANES, _LANES), lambda p_, t_: (p_, 0)),
        ),
        compiler_params=pltpu.CompilerParams(
            dimension_semantics=_dimension_semantics(n_shards),
            vmem_limit_bytes=vmem_limit,
        ),
    )(emb3, log3, lab3)

    # Finalize: a handful of scalar ops combining the per-shard partial sums.
    parts = partials.reshape(n_shards, _SUBLANES, _LANES)[:, 0, :].sum(axis=0)
    pos_sum, neg_sum, pos_cnt, neg_cnt, ce_sum = (parts[i] for i in range(_NUM_PARTIALS))
    positive_loss = jnp.where(pos_cnt > 0, pos_sum / jnp.maximum(pos_cnt, 1.0), 0.0)
    negative_loss = jnp.where(neg_cnt > 0, neg_sum / jnp.maximum(neg_cnt, 1.0), 0.0)
    amc_loss = positive_loss + negative_loss
    ce_loss = ce_sum / n
    # TODO(synk): forward only; pallas_call has no autodiff rule, add a
    # custom_vjp (d/dx acos = -rsqrt(1-x^2), clamped) before training with it.
    return ce_loss + lambda_ * amc_loss


def _reference(embeddings, logits, labels, angular_margin=0.5, lambda_=0.1):
    """Pure-JAX reference mirroring the PyTorch module."""
    n = embeddings.shape[0]
    if n % 2 == 1:
        embeddings, logits, labels = embeddings[:-1], logits[:-1], labels[:-1]
    norm = jnp.linalg.norm(embeddings, axis=1, keepdims=True)
    ne = embeddings / jnp.maximum(norm, 1e-12)
    half = embeddings.shape[0] // 2
    inner = jnp.sum(ne[:half] * ne[half:], axis=1)
    geo = jnp.arccos(jnp.clip(inner, -1.0 + 1e-5, 1.0 - 1e-5))
    pos = (labels[:half] == labels[half:]).astype(jnp.float32)
    neg = 1.0 - pos
    pos_loss = jnp.where(pos.sum() > 0,
                         jnp.sum(pos * geo ** 2) / jnp.maximum(pos.sum(), 1.0), 0.0)
    hinge = jnp.maximum(angular_margin - geo, 0.0)
    neg_loss = jnp.where(neg.sum() > 0,
                         jnp.sum(neg * hinge ** 2) / jnp.maximum(neg.sum(), 1.0), 0.0)
    amc = pos_loss + neg_loss
    lse = jax.scipy.special.logsumexp(logits, axis=1)
    picked = jnp.take_along_axis(logits, labels[:, None], axis=1)[:, 0]
    ce = jnp.mean(lse - picked)
    return ce + lambda_ * amc


if __name__ == "__main__":
    key = jax.random.PRNGKey(0)
    k1, k2, k3 = jax.random.split(key, 3)

    # Case 1: tiny f32 batch -> single full-block tile, single shard.
    N, D, C = 8, 32, 10
    embeddings = jax.random.normal(k1, (N, D), dtype=jnp.float32)
    logits = jax.random.normal(k2, (N, C), dtype=jnp.float32)
    # Few classes so positive pairs are likely (exercises both loss branches).
    labels = jax.random.randint(k3, (N,), 0, 4, dtype=jnp.int32)
    loss = jax.block_until_ready(
        amc_loss_with_pairing(embeddings, logits, labels, 0.5, 0.1))
    ref = jax.block_until_ready(_reference(embeddings, logits, labels, 0.5, 0.1))
    assert jnp.isfinite(loss)
    assert abs(float(loss) - float(ref)) < 1e-4, (float(loss), float(ref))

    # Case 2: bf16 inputs in HBM (quantized before normalization, hence the
    # looser tolerance), forced small tiles -> multi-tile grid, 2-way shards.
    k4, k5, k6 = jax.random.split(jax.random.PRNGKey(1), 3)
    N2 = 192
    emb2 = jax.random.normal(k4, (N2, D), dtype=jnp.bfloat16)
    log2 = jax.random.normal(k5, (N2, C), dtype=jnp.bfloat16)
    lab2 = jax.random.randint(k6, (N2,), 0, 4, dtype=jnp.int32)
    loss2 = jax.block_until_ready(
        amc_loss_with_pairing(emb2, log2, lab2, 0.5, 0.1, max_rows_per_tile=16))
    ref2 = jax.block_until_ready(
        _reference(emb2.astype(jnp.float32), log2.astype(jnp.float32), lab2, 0.5, 0.1))
    assert abs(float(loss2) - float(ref2)) < 2e-3, (float(loss2), float(ref2))

    # Case 3: odd batch (drop-last), half=10 not a multiple of 8 -> single
    # full-dim tile, no padding or copies.
    N3 = 21
    emb3 = jax.random.normal(k4, (N3, D), dtype=jnp.float32)
    log3 = jax.random.normal(k5, (N3, C), dtype=jnp.float32)
    lab3 = jax.random.randint(k6, (N3,), 0, 4, dtype=jnp.int32)
    loss3 = jax.block_until_ready(amc_loss_with_pairing(emb3, log3, lab3, 0.5, 0.1))
    ref3 = jax.block_until_ready(_reference(emb3, log3, lab3, 0.5, 0.1))
    assert abs(float(loss3) - float(ref3)) < 1e-4, (float(loss3), float(ref3))

    # Case 4: half=90 not divisible by the tile -> partial masked tail tile,
    # even tile count, 2-way shard axis (exercises the in-kernel mask path).
    k7, k8, k9 = jax.random.split(jax.random.PRNGKey(2), 3)
    N4 = 180
    emb4 = jax.random.normal(k7, (N4, D), dtype=jnp.float32)
    log4 = jax.random.normal(k8, (N4, C), dtype=jnp.float32)
    lab4 = jax.random.randint(k9, (N4,), 0, 4, dtype=jnp.int32)
    loss4 = jax.block_until_ready(
        amc_loss_with_pairing(emb4, log4, lab4, 0.5, 0.1, max_rows_per_tile=16))
    ref4 = jax.block_until_ready(_reference(emb4, log4, lab4, 0.5, 0.1))
    assert abs(float(loss4) - float(ref4)) < 1e-4, (float(loss4), float(ref4))

    print("KERNEL_OK")
</pallas_src>

<mosaic_0001>
module attributes {stable_mosaic.version = 11 : i64} {
  func.func @_amc_partials_kernel(%arg0: i32, %arg1: i32, %arg2: memref<2x4x32xf32, #tpu.memory_space<vmem>>, %arg3: memref<2x4x10xf32, #tpu.memory_space<vmem>>, %arg4: memref<2x4x1xi32, #tpu.memory_space<vmem>>, %arg5: memref<8x128xf32, #tpu.memory_space<vmem>>) attributes {dimension_semantics = [#tpu.dimension_semantics<parallel>, #tpu.dimension_semantics<arbitrary>], iteration_bounds = array<i64: 1, 1>, scalar_prefetch = 0 : i64, scratch_operands = 0 : i64, tpu.core_type = #tpu.core_type<tc>, window_params = [{transform_indices = @transform_0, window_bounds = array<i64: 2, 4, 32>}, {transform_indices = @transform_1, window_bounds = array<i64: 2, 4, 10>}, {transform_indices = @transform_2, window_bounds = array<i64: 2, 4, 1>}, {transform_indices = @transform_3, window_bounds = array<i64: 8, 128>}]} {
    %c0 = arith.constant 0 : index
    %c0_0 = arith.constant 0 : index
    %c0_1 = arith.constant 0 : index
    %0 = vector.load %arg2[%c0, %c0_0, %c0_1] : memref<2x4x32xf32, #tpu.memory_space<vmem>>, vector<1x4x32xf32>
    %1 = vector.shape_cast %0 : vector<1x4x32xf32> to vector<4x32xf32>
    %c1 = arith.constant 1 : index
    %c0_2 = arith.constant 0 : index
    %c0_3 = arith.constant 0 : index
    %2 = vector.load %arg2[%c1, %c0_2, %c0_3] : memref<2x4x32xf32, #tpu.memory_space<vmem>>, vector<1x4x32xf32>
    %3 = vector.shape_cast %2 : vector<1x4x32xf32> to vector<4x32xf32>
    %c0_4 = arith.constant 0 : index
    %c0_5 = arith.constant 0 : index
    %c0_6 = arith.constant 0 : index
    %4 = vector.load %arg4[%c0_4, %c0_5, %c0_6] : memref<2x4x1xi32, #tpu.memory_space<vmem>>, vector<1x4x1xi32>
    %5 = vector.shape_cast %4 : vector<1x4x1xi32> to vector<4x1xi32>
    %c1_7 = arith.constant 1 : index
    %c0_8 = arith.constant 0 : index
    %c0_9 = arith.constant 0 : index
    %6 = vector.load %arg4[%c1_7, %c0_8, %c0_9] : memref<2x4x1xi32, #tpu.memory_space<vmem>>, vector<1x4x1xi32>
    %7 = vector.shape_cast %6 : vector<1x4x1xi32> to vector<4x1xi32>
    %8 = arith.mulf %1, %1 : vector<4x32xf32>
    %cst = arith.constant dense<0.000000e+00> : vector<4xf32>
    %9 = vector.multi_reduction <add>, %8, %cst [1] : vector<4x32xf32> to vector<4xf32>
    %10 = vector.shape_cast %9 : vector<4xf32> to vector<4x1xf32>
    %cst_10 = arith.constant 1.000000e-24 : f32
    %11 = vector.broadcast %cst_10 : f32 to vector<4x1xf32>
    %12 = arith.maximumf %10, %11 : vector<4x1xf32>
    %13 = math.rsqrt %12 : vector<4x1xf32>
    %14 = arith.mulf %3, %3 : vector<4x32xf32>
    %cst_11 = arith.constant dense<0.000000e+00> : vector<4xf32>
    %15 = vector.multi_reduction <add>, %14, %cst_11 [1] : vector<4x32xf32> to vector<4xf32>
    %16 = vector.shape_cast %15 : vector<4xf32> to vector<4x1xf32>
    %cst_12 = arith.constant 1.000000e-24 : f32
    %17 = vector.broadcast %cst_12 : f32 to vector<4x1xf32>
    %18 = arith.maximumf %16, %17 : vector<4x1xf32>
    %19 = math.rsqrt %18 : vector<4x1xf32>
    %20 = arith.mulf %1, %3 : vector<4x32xf32>
    %cst_13 = arith.constant dense<0.000000e+00> : vector<4xf32>
    %21 = vector.multi_reduction <add>, %20, %cst_13 [1] : vector<4x32xf32> to vector<4xf32>
    %22 = vector.shape_cast %21 : vector<4xf32> to vector<4x1xf32>
    %23 = arith.mulf %13, %19 : vector<4x1xf32>
    %24 = arith.mulf %22, %23 : vector<4x1xf32>
    %cst_14 = arith.constant -0.999989986 : f32
    %cst_15 = arith.constant 0.999989986 : f32
    %25 = vector.broadcast %cst_14 : f32 to vector<4x1xf32>
    %26 = arith.maximumf %25, %24 : vector<4x1xf32>
    %27 = vector.broadcast %cst_15 : f32 to vector<4x1xf32>
    %28 = arith.minimumf %27, %26 : vector<4x1xf32>
    %29 = math.absf %28 : vector<4x1xf32>
    %cst_16 = arith.constant 5.000000e-01 : f32
    %30 = vector.broadcast %cst_16 : f32 to vector<4x1xf32>
    %31 = arith.cmpf ogt, %29, %30 : vector<4x1xf32>
    %cst_17 = arith.constant 1.000000e+00 : f32
    %32 = vector.broadcast %cst_17 : f32 to vector<4x1xf32>
    %33 = arith.subf %32, %29 : vector<4x1xf32>
    %cst_18 = arith.constant 5.000000e-01 : f32
    %34 = vector.broadcast %cst_18 : f32 to vector<4x1xf32>
    %35 = arith.mulf %34, %33 : vector<4x1xf32>
    %36 = arith.mulf %29, %29 : vector<4x1xf32>
    %37 = arith.select %31, %35, %36 : vector<4x1xi1>, vector<4x1xf32>
    %38 = math.sqrt %35 : vector<4x1xf32>
    %39 = arith.select %31, %38, %29 : vector<4x1xi1>, vector<4x1xf32>
    %cst_19 = arith.constant 4.216320e-02 : f32
    %40 = vector.broadcast %cst_19 : f32 to vector<4x1xf32>
    %41 = arith.mulf %40, %37 : vector<4x1xf32>
    %cst_20 = arith.constant 0.024181312 : f32
    %42 = vector.broadcast %cst_20 : f32 to vector<4x1xf32>
    %43 = arith.addf %41, %42 : vector<4x1xf32>
    %44 = arith.mulf %43, %37 : vector<4x1xf32>
    %cst_21 = arith.constant 0.0454700254 : f32
    %45 = vector.broadcast %cst_21 : f32 to vector<4x1xf32>
    %46 = arith.addf %44, %45 : vector<4x1xf32>
    %47 = arith.mulf %46, %37 : vector<4x1xf32>
    %cst_22 = arith.constant 0.0749530047 : f32
    %48 = vector.broadcast %cst_22 : f32 to vector<4x1xf32>
    %49 = arith.addf %47, %48 : vector<4x1xf32>
    %50 = arith.mulf %49, %37 : vector<4x1xf32>
    %cst_23 = arith.constant 0.166667521 : f32
    %51 = vector.broadcast %cst_23 : f32 to vector<4x1xf32>
    %52 = arith.addf %50, %51 : vector<4x1xf32>
    %53 = arith.mulf %39, %37 : vector<4x1xf32>
    %54 = arith.mulf %53, %52 : vector<4x1xf32>
    %55 = arith.addf %39, %54 : vector<4x1xf32>
    %cst_24 = arith.constant 2.000000e+00 : f32
    %56 = vector.broadcast %cst_24 : f32 to vector<4x1xf32>
    %57 = arith.mulf %56, %55 : vector<4x1xf32>
    %cst_25 = arith.constant 1.57079637 : f32
    %58 = vector.broadcast %cst_25 : f32 to vector<4x1xf32>
    %59 = arith.subf %58, %55 : vector<4x1xf32>
    %60 = arith.select %31, %57, %59 : vector<4x1xi1>, vector<4x1xf32>
    %cst_26 = arith.constant 0.000000e+00 : f32
    %61 = vector.broadcast %cst_26 : f32 to vector<4x1xf32>
    %62 = arith.cmpf olt, %28, %61 : vector<4x1xf32>
    %cst_27 = arith.constant 3.14159274 : f32
    %63 = vector.broadcast %cst_27 : f32 to vector<4x1xf32>
    %64 = arith.subf %63, %60 : vector<4x1xf32>
    %65 = arith.select %62, %64, %60 : vector<4x1xi1>, vector<4x1xf32>
    %66 = arith.cmpi eq, %5, %7 : vector<4x1xi32>
    %67 = arith.extui %66 : vector<4x1xi1> to vector<4x1xi32>
    %68 = arith.sitofp %67 : vector<4x1xi32> to vector<4x1xf32>
    %cst_28 = arith.constant 1.000000e+00 : f32
    %69 = vector.broadcast %cst_28 : f32 to vector<4x1xf32>
    %70 = arith.subf %69, %68 : vector<4x1xf32>
    %cst_29 = arith.constant 5.000000e-01 : f32
    %71 = vector.broadcast %cst_29 : f32 to vector<4x1xf32>
    %72 = arith.subf %71, %65 : vector<4x1xf32>
    %cst_30 = arith.constant 0.000000e+00 : f32
    %73 = vector.broadcast %cst_30 : f32 to vector<4x1xf32>
    %74 = arith.maximumf %72, %73 : vector<4x1xf32>
    %75 = arith.mulf %68, %65 : vector<4x1xf32>
    %76 = arith.mulf %75, %65 : vector<4x1xf32>
    %77 = vector.shape_cast %76 : vector<4x1xf32> to vector<1x4x1xf32>
    %cst_31 = arith.constant dense<0.000000e+00> : vector<1xf32>
    %78 = vector.multi_reduction <add>, %77, %cst_31 [1, 2] : vector<1x4x1xf32> to vector<1xf32>
    %79 = vector.shape_cast %78 : vector<1xf32> to vector<1x1x1xf32>
    %80 = vector.extract %79[0, 0, 0] : f32 from vector<1x1x1xf32>
    %81 = arith.mulf %70, %74 : vector<4x1xf32>
    %82 = arith.mulf %81, %74 : vector<4x1xf32>
    %83 = vector.shape_cast %82 : vector<4x1xf32> to vector<1x4x1xf32>
    %cst_32 = arith.constant dense<0.000000e+00> : vector<1xf32>
    %84 = vector.multi_reduction <add>, %83, %cst_32 [1, 2] : vector<1x4x1xf32> to vector<1xf32>
    %85 = vector.shape_cast %84 : vector<1xf32> to vector<1x1x1xf32>
    %86 = vector.extract %85[0, 0, 0] : f32 from vector<1x1x1xf32>
    %87 = vector.shape_cast %68 : vector<4x1xf32> to vector<1x4x1xf32>
    %cst_33 = arith.constant dense<0.000000e+00> : vector<1xf32>
    %88 = vector.multi_reduction <add>, %87, %cst_33 [1, 2] : vector<1x4x1xf32> to vector<1xf32>
    %89 = vector.shape_cast %88 : vector<1xf32> to vector<1x1x1xf32>
    %90 = vector.extract %89[0, 0, 0] : f32 from vector<1x1x1xf32>
    %91 = vector.shape_cast %70 : vector<4x1xf32> to vector<1x4x1xf32>
    %cst_34 = arith.constant dense<0.000000e+00> : vector<1xf32>
    %92 = vector.multi_reduction <add>, %91, %cst_34 [1, 2] : vector<1x4x1xf32> to vector<1xf32>
    %93 = vector.shape_cast %92 : vector<1xf32> to vector<1x1x1xf32>
    %94 = vector.extract %93[0, 0, 0] : f32 from vector<1x1x1xf32>
    %95 = tpu.iota {dimensions = array<i32: 1>} : vector<1x10xi32>
    %c0_35 = arith.constant 0 : index
    %c0_36 = arith.constant 0 : index
    %c0_37 = arith.constant 0 : index
    %96 = vector.load %arg3[%c0_35, %c0_36, %c0_37] : memref<2x4x10xf32, #tpu.memory_space<vmem>>, vector<1x4x10xf32>
    %97 = vector.shape_cast %96 : vector<1x4x10xf32> to vector<4x10xf32>
    %cst_38 = arith.constant dense<0xFF800000> : vector<4xf32>
    %98 = vector.multi_reduction <maximumf>, %97, %cst_38 [1] : vector<4x10xf32> to vector<4xf32>
    %99 = vector.shape_cast %98 : vector<4xf32> to vector<4x1xf32>
    %100 = vector.broadcast %99 : vector<4x1xf32> to vector<4x10xf32>
    %101 = arith.subf %97, %100 : vector<4x10xf32>
    %102 = math.exp %101 : vector<4x10xf32>
    %cst_39 = arith.constant dense<0.000000e+00> : vector<4xf32>
    %103 = vector.multi_reduction <add>, %102, %cst_39 [1] : vector<4x10xf32> to vector<4xf32>
    %104 = vector.shape_cast %103 : vector<4xf32> to vector<4x1xf32>
    %105 = math.log %104 : vector<4x1xf32>
    %106 = vector.broadcast %95 : vector<1x10xi32> to vector<4x10xi32>
    %107 = vector.broadcast %5 : vector<4x1xi32> to vector<4x10xi32>
    %108 = arith.cmpi eq, %106, %107 : vector<4x10xi32>
    %cst_40 = arith.constant 0.000000e+00 : f32
    %109 = vector.broadcast %cst_40 : f32 to vector<4x10xf32>
    %110 = arith.select %108, %101, %109 : vector<4x10xi1>, vector<4x10xf32>
    %cst_41 = arith.constant dense<0.000000e+00> : vector<4xf32>
    %111 = vector.multi_reduction <add>, %110, %cst_41 [1] : vector<4x10xf32> to vector<4xf32>
    %112 = vector.shape_cast %111 : vector<4xf32> to vector<4x1xf32>
    %113 = arith.subf %105, %112 : vector<4x1xf32>
    %c1_42 = arith.constant 1 : index
    %c0_43 = arith.constant 0 : index
    %c0_44 = arith.constant 0 : index
    %114 = vector.load %arg3[%c1_42, %c0_43, %c0_44] : memref<2x4x10xf32, #tpu.memory_space<vmem>>, vector<1x4x10xf32>
    %115 = vector.shape_cast %114 : vector<1x4x10xf32> to vector<4x10xf32>
    %cst_45 = arith.constant dense<0xFF800000> : vector<4xf32>
    %116 = vector.multi_reduction <maximumf>, %115, %cst_45 [1] : vector<4x10xf32> to vector<4xf32>
    %117 = vector.shape_cast %116 : vector<4xf32> to vector<4x1xf32>
    %118 = vector.broadcast %117 : vector<4x1xf32> to vector<4x10xf32>
    %119 = arith.subf %115, %118 : vector<4x10xf32>
    %120 = math.exp %119 : vector<4x10xf32>
    %cst_46 = arith.constant dense<0.000000e+00> : vector<4xf32>
    %121 = vector.multi_reduction <add>, %120, %cst_46 [1] : vector<4x10xf32> to vector<4xf32>
    %122 = vector.shape_cast %121 : vector<4xf32> to vector<4x1xf32>
    %123 = math.log %122 : vector<4x1xf32>
    %124 = vector.broadcast %95 : vector<1x10xi32> to vector<4x10xi32>
    %125 = vector.broadcast %7 : vector<4x1xi32> to vector<4x10xi32>
    %126 = arith.cmpi eq, %124, %125 : vector<4x10xi32>
    %cst_47 = arith.constant 0.000000e+00 : f32
    %127 = vector.broadcast %cst_47 : f32 to vector<4x10xf32>
    %128 = arith.select %126, %119, %127 : vector<4x10xi1>, vector<4x10xf32>
    %cst_48 = arith.constant dense<0.000000e+00> : vector<4xf32>
    %129 = vector.multi_reduction <add>, %128, %cst_48 [1] : vector<4x10xf32> to vector<4xf32>
    %130 = vector.shape_cast %129 : vector<4xf32> to vector<4x1xf32>
    %131 = arith.subf %123, %130 : vector<4x1xf32>
    %132 = arith.addf %113, %131 : vector<4x1xf32>
    %133 = vector.shape_cast %132 : vector<4x1xf32> to vector<1x4x1xf32>
    %cst_49 = arith.constant dense<0.000000e+00> : vector<1xf32>
    %134 = vector.multi_reduction <add>, %133, %cst_49 [1, 2] : vector<1x4x1xf32> to vector<1xf32>
    %135 = vector.shape_cast %134 : vector<1xf32> to vector<1x1x1xf32>
    %136 = vector.extract %135[0, 0, 0] : f32 from vector<1x1x1xf32>
    %137 = tpu.iota {dimensions = array<i32: 0>} : vector<8x128xi32>
    %138 = tpu.iota {dimensions = array<i32: 1>} : vector<8x128xi32>
    %c0_i32 = arith.constant 0 : i32
    %139 = vector.broadcast %c0_i32 : i32 to vector<8x128xi32>
    %140 = arith.cmpi eq, %137, %139 : vector<8x128xi32>
    %c0_i32_50 = arith.constant 0 : i32
    %141 = vector.broadcast %c0_i32_50 : i32 to vector<8x128xi32>
    %142 = arith.cmpi eq, %138, %141 : vector<8x128xi32>
    %143 = arith.andi %140, %142 : vector<8x128xi1>
    %cst_51 = arith.constant 0.000000e+00 : f32
    %144 = vector.broadcast %80 : f32 to vector<8x128xf32>
    %145 = vector.broadcast %cst_51 : f32 to vector<8x128xf32>
    %146 = arith.select %143, %144, %145 : vector<8x128xi1>, vector<8x128xf32>
    %c1_i32 = arith.constant 1 : i32
    %147 = vector.broadcast %c1_i32 : i32 to vector<8x128xi32>
    %148 = arith.cmpi eq, %138, %147 : vector<8x128xi32>
    %149 = arith.andi %140, %148 : vector<8x128xi1>
    %cst_52 = arith.constant 0.000000e+00 : f32
    %150 = vector.broadcast %86 : f32 to vector<8x128xf32>
    %151 = vector.broadcast %cst_52 : f32 to vector<8x128xf32>
    %152 = arith.select %149, %150, %151 : vector<8x128xi1>, vector<8x128xf32>
    %153 = arith.addf %146, %152 : vector<8x128xf32>
    %c2_i32 = arith.constant 2 : i32
    %154 = vector.broadcast %c2_i32 : i32 to vector<8x128xi32>
    %155 = arith.cmpi eq, %138, %154 : vector<8x128xi32>
    %156 = arith.andi %140, %155 : vector<8x128xi1>
    %cst_53 = arith.constant 0.000000e+00 : f32
    %157 = vector.broadcast %90 : f32 to vector<8x128xf32>
    %158 = vector.broadcast %cst_53 : f32 to vector<8x128xf32>
    %159 = arith.select %156, %157, %158 : vector<8x128xi1>, vector<8x128xf32>
    %160 = arith.addf %153, %159 : vector<8x128xf32>
    %c3_i32 = arith.constant 3 : i32
    %161 = vector.broadcast %c3_i32 : i32 to vector<8x128xi32>
    %162 = arith.cmpi eq, %138, %161 : vector<8x128xi32>
    %163 = arith.andi %140, %162 : vector<8x128xi1>
    %cst_54 = arith.constant 0.000000e+00 : f32
    %164 = vector.broadcast %94 : f32 to vector<8x128xf32>
    %165 = vector.broadcast %cst_54 : f32 to vector<8x128xf32>
    %166 = arith.select %163, %164, %165 : vector<8x128xi1>, vector<8x128xf32>
    %167 = arith.addf %160, %166 : vector<8x128xf32>
    %c4_i32 = arith.constant 4 : i32
    %168 = vector.broadcast %c4_i32 : i32 to vector<8x128xi32>
    %169 = arith.cmpi eq, %138, %168 : vector<8x128xi32>
    %170 = arith.andi %140, %169 : vector<8x128xi1>
    %cst_55 = arith.constant 0.000000e+00 : f32
    %171 = vector.broadcast %136 : f32 to vector<8x128xf32>
    %172 = vector.broadcast %cst_55 : f32 to vector<8x128xf32>
    %173 = arith.select %170, %171, %172 : vector<8x128xi1>, vector<8x128xf32>
    %174 = arith.addf %167, %173 : vector<8x128xf32>
    %c0_i32_56 = arith.constant 0 : i32
    %175 = arith.cmpi eq, %arg1, %c0_i32_56 : i32
    %176 = arith.extui %175 : i1 to i32
    %c0_i32_57 = arith.constant 0 : i32
    %177 = arith.cmpi ne, %176, %c0_i32_57 : i32
    scf.if %177 {
      %cst_62 = arith.constant 0.000000e+00 : f32
      %181 = vector.broadcast %cst_62 : f32 to vector<8x128xf32>
      %c0_63 = arith.constant 0 : index
      %c0_64 = arith.constant 0 : index
      %182 = vector.load %arg5[%c0_63, %c0_64] : memref<8x128xf32, #tpu.memory_space<vmem>>, vector<8x128xf32>
      tpu.vector_store %arg5[%c0_63, %c0_64], %181 {strides = array<i32>} : memref<8x128xf32, #tpu.memory_space<vmem>>, vector<8x128xf32>,
    } else {
    }
    %c0_58 = arith.constant 0 : index
    %c0_59 = arith.constant 0 : index
    %178 = vector.load %arg5[%c0_58, %c0_59] : memref<8x128xf32, #tpu.memory_space<vmem>>, vector<8x128xf32>
    %179 = arith.addf %178, %174 : vector<8x128xf32>
    %c0_60 = arith.constant 0 : index
    %c0_61 = arith.constant 0 : index
    %180 = vector.load %arg5[%c0_60, %c0_61] : memref<8x128xf32, #tpu.memory_space<vmem>>, vector<8x128xf32>
    tpu.vector_store %arg5[%c0_60, %c0_61], %179 {strides = array<i32>} : memref<8x128xf32, #tpu.memory_space<vmem>>, vector<8x128xf32>,
    return
  }
  func.func @transform_0(%arg0: i32, %arg1: i32) -> (i32, i32, i32) {
    %c1_i32 = arith.constant 1 : i32
    %0 = arith.muli %arg0, %c1_i32 : i32
    %1 = arith.addi %0, %arg1 : i32
    %c0_i32 = arith.constant 0 : i32
    %c0_i32_0 = arith.constant 0 : i32
    %c0_i32_1 = arith.constant 0 : i32
    return %c0_i32, %1, %c0_i32_0 : i32, i32, i32
  }
  func.func @transform_1(%arg0: i32, %arg1: i32) -> (i32, i32, i32) {
    %c1_i32 = arith.constant 1 : i32
    %0 = arith.muli %arg0, %c1_i32 : i32
    %1 = arith.addi %0, %arg1 : i32
    %c0_i32 = arith.constant 0 : i32
    %c0_i32_0 = arith.constant 0 : i32
    %c0_i32_1 = arith.constant 0 : i32
    return %c0_i32, %1, %c0_i32_0 : i32, i32, i32
  }
  func.func @transform_2(%arg0: i32, %arg1: i32) -> (i32, i32, i32) {
    %c1_i32 = arith.constant 1 : i32
    %0 = arith.muli %arg0, %c1_i32 : i32
    %1 = arith.addi %0, %arg1 : i32
    %c0_i32 = arith.constant 0 : i32
    %c0_i32_0 = arith.constant 0 : i32
    %c0_i32_1 = arith.constant 0 : i32
    return %c0_i32, %1, %c0_i32_0 : i32, i32, i32
  }
  func.func @transform_3(%arg0: i32, %arg1: i32) -> (i32, i32) {
    %c0_i32 = arith.constant 0 : i32
    %c0_i32_0 = arith.constant 0 : i32
    return %arg0, %c0_i32 : i32, i32
  }
}

</mosaic_0001>

<llo_original>
// kernel: tpu_custom_call.1
$region0: #{tpu_custom_call.1}
  #allocation0 [shape = 'u32[]', space=smem, size = 0x4, offset = 0x4, fixed_abs, tag = 'smem constant byte address 0x4 - core index']
  #allocation1 [shape = 'u32[72,128]{1,0:T(1,128)}', space=vmem, size = 0x9000, scoped, tag = 'internal scratch']
  %s0 = inlined_call_operand.vmem [shape: f32[2,4,32], index: 0, kind: input, shape index: {}]
  %s1 = inlined_call_operand.hbm [shape: f32[2,4,10], index: 1, kind: input, shape index: {}]
  %s2 = inlined_call_operand.vmem [shape: s32[2,4,1], index: 2, kind: input, shape index: {}]
  %s3 = inlined_call_operand.hbm [shape: f32[8,128], index: 3, kind: output, shape index: {}]
  %s4 = sld [smem:[#allocation0]]
  $region30: #{tpu_custom_call.1} parent=0
    _
  %s6 = ssub.s32 1, %s4
  %s7 = scalar_select 0, %s6, %s4
  $region1: #{tpu_custom_call.1} parent=0
    #allocation2 [shape = 'u8[4096]{0}', space=vmem, size = 0x1000, scoped, tag = 'input window, operand 1, single buffered']
    #allocation3 [shape = 's32[1]{0}', space=sflag, size = 0x4, scoped, tag = 'scoped memory for tpu_custom_call.1']
    #allocation4 [shape = 's32[1]{0}', space=sflag, size = 0x4, scoped, tag = 'scoped memory for tpu_custom_call.1']
    #allocation5 [shape = 'u8[4096]{0}', space=vmem, size = 0x1000, scoped, tag = 'output window, operand 0, single buffered']
    %8 = vsyncpa [#allocation3], 0
    %9 = vsyncpa [#allocation4], 0
    // Predicated region
    $region2: #{tpu_custom_call.1} parent=1 // pred_check
      _
    $region3: #{tpu_custom_call.1} parent=1 // pred_check_branch
      %11 = sbr.rel (0) target = $region5
    $region4: #{tpu_custom_call.1} parent=1 // pred_region
      %s12 = sadd.s32 0, 0
      %p13 = scmp.lt.s32.totalorder %s12, 0
      %s14 = scalar_select %p13, %s12, 0
      %s15 = smul.addr %s14, 4
      %s16 = scalar_lea.vmem %s0, %s15
      %s17 = sadd.s32 0, 0
    $region5: #{tpu_custom_call.1} parent=1 // pred_fallthru
      _
    // Predicated region
    $region6: #{tpu_custom_call.1} parent=1 // pred_check
      _
    $region7: #{tpu_custom_call.1} parent=1 // pred_check_branch
      %19 = sbr.rel (0) target = $region9
    $region8: #{tpu_custom_call.1} parent=1 // pred_region
      %s20 = sadd.s32 0, 0
      %22 = vsyncadd [#allocation3], 0
      %s23 = smul.addr %s20, 4
      %s24 = scalar_lea.hbm %s1, %s23
      %s25 = sshll.u32 %s24, 4
      %s26 = int_to_ptr.hbm [resolvable:$true] %s25
      %s27 = sshll.u32 [#allocation2], 4
      %s28 = int_to_ptr.vmem [resolvable:$true] %s27
      %33 = dma.hbm_to_vmem [thread:$0]  %s26, 128, %s28, [#allocation3], 64, 64, 4
    $region9: #{tpu_custom_call.1} parent=1 // pred_fallthru
      _
    // Predicated region
    $region10: #{tpu_custom_call.1} parent=1 // pred_check
      _
    $region11: #{tpu_custom_call.1} parent=1 // pred_check_branch
      %35 = sbr.rel (0) target = $region13
    $region12: #{tpu_custom_call.1} parent=1 // pred_region
      %s36 = sadd.s32 0, 0
      %p37 = scmp.lt.s32.totalorder %s36, 0
      %s38 = scalar_select %p37, %s36, 0
      %s39 = smul.addr %s38, 4
      %s40 = scalar_lea.vmem %s2, %s39
      %s41 = sadd.s32 0, 0
    $region13: #{tpu_custom_call.1} parent=1 // pred_fallthru
      _
    // Predicated region
    $region14: #{tpu_custom_call.1} parent=1 // pred_check
      _
    $region15: #{tpu_custom_call.1} parent=1 // pred_check_branch
      %43 = sbr.rel (0) target = $region17
    $region16: #{tpu_custom_call.1} parent=1 // pred_region
      %45 = dma.done [#allocation3], 128
    $region17: #{tpu_custom_call.1} parent=1 // pred_fallthru
      _
    %s46 = sadd.s32 0, 0
    %p47 = scmp.lt.s32.totalorder %s46, 0
    %s48 = scalar_select %p47, %s46, 0
    %s49 = smul.addr %s48, 4
    %s50 = scalar_lea.vmem %s0, %s49
    %s51 = sadd.s32 0, 0
    %p52 = scmp.lt.s32.totalorder %s51, 0
    %s53 = scalar_select %p52, %s51, 0
    %s54 = smul.addr %s53, 4
    %s55 = scalar_lea.vmem %s2, %s54
    %s56 = sadd.s32 0, 0
    %p57 = scmp.lt.s32.totalorder %s56, 0
    %s58 = scalar_select %p57, %s56, 0
    %s59 = smul.addr %s58, 4
    %s60 = scalar_lea.vmem %s0, %s59
    %s61 = sadd.s32 0, 0
    %s62 = sadd.s32 0, 0
    %s63 = sadd.s32 0, 0
    %p64 = scmp.lt.s32.totalorder %s63, 0
    %s65 = scalar_select %p64, %s63, 0
    %s66 = smul.addr %s65, 4
    %s67 = scalar_lea.vmem %s2, %s66
    %s68 = sadd.s32 0, 0
    %v69 = vld [vmem:[%s60] sm:$0xf]
    %s70 = scalar_lea.vmem %s60, 4
    %v71 = vld [vmem:[%s70] sm:$0xf]
    %v72 = vld [vmem:[%s67] sm:$0xf]
    %s73 = scalar_lea.vmem %s67, 4
    %v74 = vld [vmem:[%s73] sm:$0xf]
    %v75 = vmul.f32 %v69, %v69
    %vm76 = vcmask 257024
    %v77 = vsel %vm76, %v75, 0.0
    %78 = vadd.xlane.f32.xlu0 %v77
    %v79 = vpop.xlane.xlu0 %78
    %v80 = vmax.f32 %v79, 1e-24
    %v81 = vrsqrt.pop %v80
    %v82 = vmul.f32 %v81, %v80
    %v83 = vmul.f32 %v82, %v81
    %v84 = vmul.f32 0.5, %v83
    %v85 = vsub.f32 1.5, %v84
    %v86 = vmul.f32 %v81, %v85
    %vm87 = vweird.f32 %v80
    %vm88 = vweird.f32 %v81
    %vm89 = vmor %vm87, %vm88
    %v90 = vsel %vm89, %v81, %v86
    %v91 = vmul.f32 %v71, %v71
    %v92 = vsel %vm76, %v91, 0.0
    %93 = vadd.xlane.f32.xlu0 %v92
    %v94 = vpop.xlane.xlu0 %93
    %v95 = vmax.f32 %v94, 1e-24
    %v96 = vrsqrt.pop %v95
    %v97 = vmul.f32 %v96, %v95
    %v98 = vmul.f32 %v97, %v96
    %v99 = vmul.f32 0.5, %v98
    %v100 = vsub.f32 1.5, %v99
    %v101 = vmul.f32 %v96, %v100
    %vm102 = vweird.f32 %v95
    %vm103 = vweird.f32 %v96
    %vm104 = vmor %vm102, %vm103
    %v105 = vsel %vm104, %v96, %v101
    %v106 = vmul.f32 %v69, %v71
    %v107 = vsel %vm76, %v106, 0.0
    %108 = vadd.xlane.f32.xlu0 %v107
    %v109 = vpop.xlane.xlu0 %108
    %v110 = vmul.f32 %v90, %v105
    %v111 = vmul.f32 %v109, %v110
    %v112 = vmax.f32 %v111, -0.99999
    %v113 = vmin.f32 %v112, 0.99999
    %v114 = vand.u32 2147483647, %v113
    %vm115 = vcmp.gt.f32.partialorder %v114, 0.5
    %v116 = vsub.f32 1.0, %v114
    %v117 = vmul.f32 %v116, 0.5
    %v118 = vmul.f32 %v114, %v114
    %v119 = vsel %vm115, %v117, %v118
    %v120 = vrsqrt.pop %v117
    %v121 = vmul.f32 %v120, %v117
    %v122 = vmul.f32 %v121, %v120
    %v123 = vmul.f32 0.5, %v122
    %v124 = vsub.f32 1.5, %v123
    %v125 = vmul.f32 %v120, %v124
    %v126 = vmul.f32 %v117, %v125
    %vm127 = vcmp.eq.f32.partialorder %v117, inf
    %v128 = vsel %vm127, %v117, %v126
    %vm129 = vcmp.eq.f32.partialorder %v117, 0.0
    %v130 = vand.u32 %v117, 2147483648
    %v131 = vsel %vm129, %v130, %v128
    %v132 = vsel %vm115, %v131, %v114
    %v133 = vmul.f32 %v119, 0.0421632
    %v134 = vadd.f32 %v133, 0.024181312
    %v135 = vmul.f32 %v134, %v119
    %v136 = vadd.f32 %v135, 0.045470025
    %v137 = vmul.f32 %v136, %v119
    %v138 = vadd.f32 %v137, 0.074953005
    %v139 = vmul.f32 %v138, %v119
    %v140 = vadd.f32 %v139, 0.16666752
    %v141 = vmul.f32 %v132, %v119
    %v142 = vmul.f32 %v141, %v140
    %v143 = vadd.f32 %v132, %v142
    %v144 = vmul.f32 %v143, 2.0
    %v145 = vsub.f32 1.5707964, %v143
    %v146 = vsel %vm115, %v144, %v145
    %vm147 = vcmp.lt.f32.partialorder %v113, 0.0
    %v148 = vsub.f32 3.1415927, %v146
    %v149 = vsel %vm147, %v148, %v146
    %vm150 = vcmp.eq.s32.totalorder %v72, %v74
    %v151 = vsel %vm150, 1, 0
    %v152 = vcvt.s32.f32 %v151
    %v153 = vsub.f32 1.0, %v152
    %v154 = vsub.f32 0.5, %v149
    %v155 = vmax.f32 %v154, 0.0
    %v156 = vmul.f32 %v152, %v149
    %v157 = vmul.f32 %v156, %v149
    %vm158 = vcmask 3072
    %v159 = vsel %vm158, %v157, 0.0
    %160 = vadd.xlane.f32.xlu0 %v159
    %v161 = vpop.xlane.xlu0 %160
    %v162 = vrot.slane %v161, 4
    %v163 = vadd.f32 %v161, %v162
    %v164 = vrot.slane %v163, 2
    %v165 = vadd.f32 %v163, %v164
    %v166 = vrot.slane %v165, 1
    %v167 = vadd.f32 %v165, %v166
    %s168 = vtos %v167
    %v169 = vmul.f32 %v153, %v155
    %v170 = vmul.f32 %v169, %v155
    %v171 = vsel %vm158, %v170, 0.0
    %172 = vadd.xlane.f32.xlu0 %v171
    %v173 = vpop.xlane.xlu0 %172
    %v174 = vrot.slane %v173, 4
    %v175 = vadd.f32 %v173, %v174
    %v176 = vrot.slane %v175, 2
    %v177 = vadd.f32 %v175, %v176
    %v178 = vrot.slane %v177, 1
    %v179 = vadd.f32 %v177, %v178
    %s180 = vtos %v179
    %v181 = vsel %vm158, %v152, 0.0
    %182 = vadd.xlane.f32.xlu0 %v181
    %v183 = vpop.xlane.xlu0 %182
    %v184 = vrot.slane %v183, 4
    %v185 = vadd.f32 %v183, %v184
    %v186 = vrot.slane %v185, 2
    %v187 = vadd.f32 %v185, %v186
    %v188 = vrot.slane %v187, 1
    %v189 = vadd.f32 %v187, %v188
    %s190 = vtos %v189
    %v191 = vsel %vm158, %v153, 0.0
    %192 = vadd.xlane.f32.xlu0 %v191
    %v193 = vpop.xlane.xlu0 %192
    %v194 = vrot.slane %v193, 4
    %v195 = vadd.f32 %v193, %v194
    %v196 = vrot.slane %v195, 2
    %v197 = vadd.f32 %v195, %v196
    %v198 = vrot.slane %v197, 1
    %v199 = vadd.f32 %v197, %v198
    %s200 = vtos %v199
    %v201 = vlaneseq
    %v202 = vand.u32 %v201, 127
    %v203 = vld [vmem:[#allocation2] sm:$0xf]
    %vm204 = vcmask 76800
    %v205 = vsel %vm204, %v203, -inf
    %206 = vmax.xlane.f32.xlu0 %v205
    %v207 = vpop.xlane.xlu0 %206
    %v208 = vsub.f32 %v203, %v207
    %v209 = vmul.f32 %v208, 1.442695
    %v210 = vpow.pop %v209
    %v211 = vsel %vm204, %v210, 0.0
    %212 = vadd.xlane.f32.xlu0 %v211
    %v213 = vpop.xlane.xlu0 %212
    %v214 = vlog2.pop %v213
    %v215 = vmul.f32 %v214, 0.6931472
    %216 = vset.pattern.permute.xlu0 0
    %217 = vperm.xlu0 %216, %v72
    %v218 = vpop.permute.xlu0 %217
    %vm219 = vcmp.eq.s32.totalorder %v202, %v218
    %v220 = vsel %vm219, %v208, 0.0
    %v221 = vsel %vm204, %v220, 0.0
    %222 = vadd.xlane.f32.xlu0 %v221
    %v223 = vpop.xlane.xlu0 %222
    %v224 = vsub.f32 %v215, %v223
    %s225 = scalar_lea.vmem [#allocation2], 4
    %v226 = vld [vmem:[%s225] sm:$0xf]
    %v227 = vsel %vm204, %v226, -inf
    %228 = vmax.xlane.f32.xlu0 %v227
    %v229 = vpop.xlane.xlu0 %228
    %v230 = vsub.f32 %v226, %v229
    %v231 = vmul.f32 %v230, 1.442695
    %v232 = vpow.pop %v231
    %v233 = vsel %vm204, %v232, 0.0
    %234 = vadd.xlane.f32.xlu0 %v233
    %v235 = vpop.xlane.xlu0 %234
    %v236 = vlog2.pop %v235
    %v237 = vmul.f32 %v236, 0.6931472
    %238 = vset.pattern.permute.xlu0 0
    %239 = vperm.xlu0 %238, %v74
    %v240 = vpop.permute.xlu0 %239
    %vm241 = vcmp.eq.s32.totalorder %v202, %v240
    %v242 = vsel %vm241, %v230, 0.0
    %v243 = vsel %vm204, %v242, 0.0
    %244 = vadd.xlane.f32.xlu0 %v243
    %v245 = vpop.xlane.xlu0 %244
    %v246 = vsub.f32 %v237, %v245
    %v247 = vadd.f32 %v224, %v246
    %v248 = vsel %vm158, %v247, 0.0
    %249 = vadd.xlane.f32.xlu0 %v248
    %v250 = vpop.xlane.xlu0 %249
    %v251 = vrot.slane %v250, 4
    %v252 = vadd.f32 %v250, %v251
    %v253 = vrot.slane %v252, 2
    %v254 = vadd.f32 %v252, %v253
    %v255 = vrot.slane %v254, 1
    %v256 = vadd.f32 %v254, %v255
    %s257 = vtos %v256
    %v258 = vlaneseq
    %v259 = vshrl.u32 %v258, 7
    %vm260 = vcmp.eq.s32.totalorder %v259, 0
    %vm261 = vcmp.eq.s32.totalorder %v202, 0
    %vm262 = vmand %vm260, %vm261
    %v263 = vstv %s168
    %v264 = vsel %vm262, %v263, 0.0
    %vm265 = vcmp.eq.s32.totalorder %v202, 1
    %vm266 = vmand %vm260, %vm265
    %v267 = vstv %s180
    %v268 = vsel %vm266, %v267, 0.0
    %v269 = vadd.f32 %v264, %v268
    %vm270 = vcmp.eq.s32.totalorder %v202, 2
    %vm271 = vmand %vm260, %vm270
    %v272 = vstv %s190
    %v273 = vsel %vm271, %v272, 0.0
    %v274 = vadd.f32 %v269, %v273
    %vm275 = vcmp.eq.s32.totalorder %v202, 3
    %vm276 = vmand %vm260, %vm275
    %v277 = vstv %s200
    %v278 = vsel %vm276, %v277, 0.0
    %v279 = vadd.f32 %v274, %v278
    %vm280 = vcmp.eq.s32.totalorder %v202, 4
    %vm281 = vmand %vm260, %vm280
    %v282 = vstv %s257
    %v283 = vsel %vm281, %v282, 0.0
    %v284 = vadd.f32 %v279, %v283
    %p285 = scmp.eq.s32.totalorder 0, 0
    // Predicated region
    $region18: #{tpu_custom_call.1} parent=1 // pred_check
      %p286 = pneg %p285
    $region19: #{tpu_custom_call.1} parent=1 // pred_check_branch
      %288 = sbr.rel (%p286) target = $region21
    $region20: #{tpu_custom_call.1} parent=1 // pred_region
      %289 = vst [vmem:[#allocation5] sm:$0xff] 0.0
    $region21: #{tpu_custom_call.1} parent=1 // pred_fallthru
      _
    %v290 = vld [vmem:[#allocation5] sm:$0xff]
    %v291 = vadd.f32 %v290, %v284
    %292 = vst [vmem:[#allocation5] sm:$0xff] %v291
    // Predicated region
    $region22: #{tpu_custom_call.1} parent=1 // pred_check
      _
    $region23: #{tpu_custom_call.1} parent=1 // pred_check_branch
      %294 = sbr.rel (0) target = $region25
    $region24: #{tpu_custom_call.1} parent=1 // pred_region
      %296 = vsyncadd [#allocation4], 0
      %s298 = sshll.u32 [#allocation5], 4
      %s299 = int_to_ptr.vmem [resolvable:$true] %s298
      %s300 = sshll.u32 %s3, 4
      %s301 = int_to_ptr.hbm [resolvable:$true] %s300
      %303 = dma.vmem_to_hbm [thread:$0]  %s299, 128, %s301, [#allocation4]
    $region25: #{tpu_custom_call.1} parent=1 // pred_fallthru
      _
    // Predicated region
    $region26: #{tpu_custom_call.1} parent=1 // pred_check
      _
    $region27: #{tpu_custom_call.1} parent=1 // pred_check_branch
      %305 = sbr.rel (0) target = $region29
    $region28: #{tpu_custom_call.1} parent=1 // pred_region
      %307 = dma.done [#allocation4], 128
    $region29: #{tpu_custom_call.1} parent=1 // pred_fallthru
      _
    %308 = vsyncpa [#allocation3], 1
    %309 = vsyncpa [#allocation4], 1

</llo_original>
